<compile_context>
chip_gen: v7x
topology: tpu7x:2x2x1
jax: 0.10.0
libtpu: 0.0.40
codegen_flags: <defaults>
</compile_context>

<pallas_src>
import jax
import jax.numpy as jnp
from jax.experimental import pallas as pl
from jax.experimental.pallas import tpu as pltpu


LN_EPS = 1e-5  # PyTorch nn.LayerNorm default


def _round_up(v, m):
    return (v + m - 1) // m * m


def _patch_merging_kernel(x_ref, gamma_ref, beta_ref, w_ref, o_ref):
    # x_ref:     (tm, 4C)     row tile of merged patches (bf16 or input dtype)
    # gamma_ref: (1, 4C)      LayerNorm scale (f32)
    # beta_ref:  (1, 4C)      LayerNorm shift (f32)
    # w_ref:     (4C, N_pad)  reduction weight, zero-padded columns (bf16)
    # o_ref:     (tm, N_pad)
    x = x_ref[...].astype(jnp.float32)

    # LayerNorm over the last (4C) axis -- statistics in f32.
    mean = jnp.mean(x, axis=-1, keepdims=True)
    centered = x - mean
    var = jnp.mean(centered * centered, axis=-1, keepdims=True)
    x_norm = centered * jax.lax.rsqrt(var + LN_EPS)
    x_norm = x_norm * gamma_ref[...] + beta_ref[...]

    # Linear reduction 4C -> 2C (no bias) on the MXU: bf16 operands, f32 accum.
    y = jnp.dot(x_norm.astype(w_ref.dtype), w_ref[...],
                preferred_element_type=jnp.float32)
    o_ref[...] = y.astype(o_ref.dtype)


def patch_merging_pallas(x, H, W, gamma, beta, weight_pt, *, row_tile=1024):
    """Pallas implementation of PatchMerging.forward.

    x         : (B, L, C) with L == H * W
    gamma,beta: (4C,) LayerNorm affine params
    weight_pt : (2C, 4C) PyTorch Linear weight (out_features, in_features)
    returns   : (B, ceil(H/2)*ceil(W/2), 2C), dtype of x
    """
    B, L, C = x.shape
    assert L == H * W, "input feature has wrong size"
    K = 4 * C
    N = 2 * C
    out_dtype = x.dtype

    # bf16 MXU path (keeps f32 accumulation inside the kernel).
    mm_dtype = jnp.bfloat16 if x.dtype == jnp.float32 else x.dtype

    # ---- glue: spatial even/odd gather + concat (data movement only) ----
    # TODO(synk): fuse this gather/concat into the pallas_call (per-quadrant
    # BlockSpecs on the (B, Hp/2, 2, Wp/2, 2, C) view, or allow_input_fusion) to
    # remove the extra HBM round trip of the (M, 4C) slab.
    xr = x.astype(mm_dtype).reshape(B, H, W, C)
    if (H % 2 == 1) or (W % 2 == 1):
        xr = jnp.pad(xr, ((0, 0), (0, H % 2), (0, W % 2), (0, 0)))
    Hp, Wp = xr.shape[1], xr.shape[2]
    x0 = xr[:, 0::2, 0::2, :]
    x1 = xr[:, 1::2, 0::2, :]
    x2 = xr[:, 0::2, 1::2, :]
    x3 = xr[:, 1::2, 1::2, :]
    xm = jnp.concatenate([x0, x1, x2, x3], axis=-1)          # (B, Hp/2, Wp/2, 4C)
    M = B * (Hp // 2) * (Wp // 2)
    xm = xm.reshape(M, K)

    # ---- row tiling: big tiles, round-up padding instead of divisibility assert ----
    tm = _round_up(min(row_tile, M), 8)
    M_pad = _round_up(M, tm)
    if M_pad != M:
        xm = jnp.pad(xm, ((0, M_pad - M), (0, 0)))
    grid = (M_pad // tm,)

    # ---- lane-dense output: pad output width to a multiple of 128 lanes ----
    N_pad = max(128, _round_up(N, 128))
    w = weight_pt.T.astype(mm_dtype)                          # (4C, 2C)
    if N_pad != N:
        w = jnp.pad(w, ((0, 0), (0, N_pad - N)))              # (4C, N_pad)

    gamma2d = gamma.astype(jnp.float32).reshape(1, K)
    beta2d = beta.astype(jnp.float32).reshape(1, K)

    cost = pl.CostEstimate(
        flops=2 * M_pad * K * N_pad + 8 * M_pad * K,
        transcendentals=M_pad,
        bytes_accessed=(xm.size * xm.dtype.itemsize
                        + w.size * w.dtype.itemsize
                        + 2 * K * 4
                        + M_pad * N_pad * jnp.dtype(out_dtype).itemsize),
    )

    out = pl.pallas_call(
        _patch_merging_kernel,
        out_shape=jax.ShapeDtypeStruct((M_pad, N_pad), out_dtype),
        grid_spec=pltpu.PrefetchScalarGridSpec(
            num_scalar_prefetch=0,
            grid=grid,
            in_specs=[
                pl.BlockSpec((tm, K), lambda i: (i, 0)),       # x rows (streamed)
                pl.BlockSpec((1, K), lambda i: (0, 0)),        # gamma (replicated)
                pl.BlockSpec((1, K), lambda i: (0, 0)),        # beta  (replicated)
                pl.BlockSpec((K, N_pad), lambda i: (0, 0)),    # weight (replicated)
            ],
            out_specs=pl.BlockSpec((tm, N_pad), lambda i: (i, 0)),
        ),
        compiler_params=pltpu.CompilerParams(
            dimension_semantics=("parallel",),
            vmem_limit_bytes=64 * 1024 * 1024,                 # fits v7x's 64 MiB VMEM
        ),
        cost_estimate=cost,
    )(xm, gamma2d, beta2d, w)

    out = out[:M, :N]
    return out.reshape(B, (Hp // 2) * (Wp // 2), N)


def patch_merging_ref(x, H, W, gamma, beta, weight_pt):
    """Pure-JAX f32 reference matching the PyTorch module semantics."""
    B, L, C = x.shape
    xr = x.reshape(B, H, W, C)
    if (H % 2 == 1) or (W % 2 == 1):
        xr = jnp.pad(xr, ((0, 0), (0, H % 2), (0, W % 2), (0, 0)))
    x0 = xr[:, 0::2, 0::2, :]
    x1 = xr[:, 1::2, 0::2, :]
    x2 = xr[:, 0::2, 1::2, :]
    x3 = xr[:, 1::2, 1::2, :]
    xm = jnp.concatenate([x0, x1, x2, x3], axis=-1)
    xm = xm.reshape(B, -1, 4 * C)
    mean = jnp.mean(xm, axis=-1, keepdims=True)
    var = jnp.mean((xm - mean) ** 2, axis=-1, keepdims=True)
    xn = (xm - mean) / jnp.sqrt(var + LN_EPS)
    xn = xn * gamma + beta
    return jnp.einsum("blk,ok->blo", xn, weight_pt)


def _run_case(key, B, H, W, dim, row_tile):
    kx, kg, kb, kw = jax.random.split(key, 4)
    x = jax.random.normal(kx, (B, H * W, dim), dtype=jnp.float32)
    gamma = 1.0 + 0.1 * jax.random.normal(kg, (4 * dim,), dtype=jnp.float32)
    beta = 0.1 * jax.random.normal(kb, (4 * dim,), dtype=jnp.float32)
    weight_pt = (jax.random.normal(kw, (2 * dim, 4 * dim), dtype=jnp.float32)
                 / jnp.sqrt(4.0 * dim))

    out = patch_merging_pallas(x, H, W, gamma, beta, weight_pt, row_tile=row_tile)
    out = jax.block_until_ready(out)

    ref = patch_merging_ref(x, H, W, gamma, beta, weight_pt)
    Hp, Wp = H + H % 2, W + W % 2
    assert out.shape == (B, (Hp // 2) * (Wp // 2), 2 * dim), out.shape
    # bf16 MXU operands with f32 accumulation -> relaxed tolerance vs f32 ref.
    assert jnp.allclose(out, ref, atol=5e-2, rtol=5e-2), (
        float(jnp.max(jnp.abs(out - ref))))


if __name__ == "__main__":
    key = jax.random.PRNGKey(0)
    k1, k2 = jax.random.split(key)

    # Case 1: odd H/W (exercises spatial padding) and M not a multiple of the tile
    # (exercises row round-up padding); 2C=64 < 128 exercises output lane padding.
    _run_case(k1, B=2, H=9, W=13, dim=32, row_tile=1024)

    # Case 2: even sizes, multi-block parallel grid (row_tile forces 4 blocks),
    # 2C=128 already lane-dense.
    _run_case(k2, B=2, H=16, W=16, dim=64, row_tile=32)

    print("KERNEL_OK")
</pallas_src>

<mosaic_0001>
module attributes {stable_mosaic.version = 11 : i64} {
  func.func @_patch_merging_kernel(%arg0: i32, %arg1: memref<72x128xbf16, #tpu.memory_space<vmem>>, %arg2: memref<1x128xf32, #tpu.memory_space<vmem>>, %arg3: memref<1x128xf32, #tpu.memory_space<vmem>>, %arg4: memref<128x128xbf16, #tpu.memory_space<vmem>>, %arg5: memref<72x128xf32, #tpu.memory_space<vmem>>) attributes {dimension_semantics = [#tpu.dimension_semantics<parallel>], iteration_bounds = array<i64: 1>, scalar_prefetch = 0 : i64, scratch_operands = 0 : i64, tpu.core_type = #tpu.core_type<tc>, window_params = [{transform_indices = @transform_0, window_bounds = array<i64: 72, 128>}, {pipeline_mode = #tpu.pipeline_mode<synchronous>, transform_indices = @transform_1, window_bounds = array<i64: 1, 128>}, {pipeline_mode = #tpu.pipeline_mode<synchronous>, transform_indices = @transform_2, window_bounds = array<i64: 1, 128>}, {pipeline_mode = #tpu.pipeline_mode<synchronous>, transform_indices = @transform_3, window_bounds = array<i64: 128, 128>}, {transform_indices = @transform_4, window_bounds = array<i64: 72, 128>}]} {
    %c0 = arith.constant 0 : index
    %c0_0 = arith.constant 0 : index
    %0 = vector.load %arg1[%c0, %c0_0] : memref<72x128xbf16, #tpu.memory_space<vmem>>, vector<72x128xbf16>
    %1 = arith.extf %0 : vector<72x128xbf16> to vector<72x128xf32>
    %cst = arith.constant dense<0.000000e+00> : vector<72xf32>
    %2 = vector.multi_reduction <add>, %1, %cst [1] : vector<72x128xf32> to vector<72xf32>
    %3 = vector.shape_cast %2 : vector<72xf32> to vector<72x1xf32>
    %cst_1 = arith.constant 1.280000e+02 : f32
    %4 = vector.broadcast %cst_1 : f32 to vector<72x1xf32>
    %5 = arith.divf %3, %4 : vector<72x1xf32>
    %6 = vector.broadcast %5 : vector<72x1xf32> to vector<72x128xf32>
    %7 = arith.subf %1, %6 : vector<72x128xf32>
    %8 = arith.mulf %7, %7 : vector<72x128xf32>
    %cst_2 = arith.constant dense<0.000000e+00> : vector<72xf32>
    %9 = vector.multi_reduction <add>, %8, %cst_2 [1] : vector<72x128xf32> to vector<72xf32>
    %10 = vector.shape_cast %9 : vector<72xf32> to vector<72x1xf32>
    %cst_3 = arith.constant 1.280000e+02 : f32
    %11 = vector.broadcast %cst_3 : f32 to vector<72x1xf32>
    %12 = arith.divf %10, %11 : vector<72x1xf32>
    %cst_4 = arith.constant 9.99999974E-6 : f32
    %13 = vector.broadcast %cst_4 : f32 to vector<72x1xf32>
    %14 = arith.addf %12, %13 : vector<72x1xf32>
    %15 = math.rsqrt %14 : vector<72x1xf32>
    %16 = vector.broadcast %15 : vector<72x1xf32> to vector<72x128xf32>
    %17 = arith.mulf %7, %16 : vector<72x128xf32>
    %c0_5 = arith.constant 0 : index
    %c0_6 = arith.constant 0 : index
    %18 = vector.load %arg2[%c0_5, %c0_6] : memref<1x128xf32, #tpu.memory_space<vmem>>, vector<1x128xf32>
    %19 = vector.broadcast %18 : vector<1x128xf32> to vector<72x128xf32>
    %20 = arith.mulf %17, %19 : vector<72x128xf32>
    %c0_7 = arith.constant 0 : index
    %c0_8 = arith.constant 0 : index
    %21 = vector.load %arg3[%c0_7, %c0_8] : memref<1x128xf32, #tpu.memory_space<vmem>>, vector<1x128xf32>
    %22 = vector.broadcast %21 : vector<1x128xf32> to vector<72x128xf32>
    %23 = arith.addf %20, %22 : vector<72x128xf32>
    %24 = arith.truncf %23 : vector<72x128xf32> to vector<72x128xbf16>
    %c0_9 = arith.constant 0 : index
    %c0_10 = arith.constant 0 : index
    %25 = vector.load %arg4[%c0_9, %c0_10] : memref<128x128xbf16, #tpu.memory_space<vmem>>, vector<128x128xbf16>
    %cst_11 = arith.constant dense<0.000000e+00> : vector<72x128xf32>
    %26 = tpu.matmul %24, %25, %cst_11 {dimension_numbers = #tpu.dot_dimension_numbers<[1], [0], [0], [1], [0, 0, 1, 1], [], []>} : vector<72x128xbf16>, vector<128x128xbf16>, vector<72x128xf32> -> vector<72x128xf32>
    %c0_12 = arith.constant 0 : index
    %c0_13 = arith.constant 0 : index
    %27 = vector.load %arg5[%c0_12, %c0_13] : memref<72x128xf32, #tpu.memory_space<vmem>>, vector<72x128xf32>
    tpu.vector_store %arg5[%c0_12, %c0_13], %26 {strides = array<i32>} : memref<72x128xf32, #tpu.memory_space<vmem>>, vector<72x128xf32>,
    return
  }
  func.func @transform_0(%arg0: i32) -> (i32, i32) {
    %c0_i32 = arith.constant 0 : i32
    %c0_i32_0 = arith.constant 0 : i32
    return %arg0, %c0_i32 : i32, i32
  }
  func.func @transform_1(%arg0: i32) -> (i32, i32) {
    %c0_i32 = arith.constant 0 : i32
    %c0_i32_0 = arith.constant 0 : i32
    %c0_i32_1 = arith.constant 0 : i32
    return %c0_i32, %c0_i32_0 : i32, i32
  }
  func.func @transform_2(%arg0: i32) -> (i32, i32) {
    %c0_i32 = arith.constant 0 : i32
    %c0_i32_0 = arith.constant 0 : i32
    %c0_i32_1 = arith.constant 0 : i32
    return %c0_i32, %c0_i32_0 : i32, i32
  }
  func.func @transform_3(%arg0: i32) -> (i32, i32) {
    %c0_i32 = arith.constant 0 : i32
    %c0_i32_0 = arith.constant 0 : i32
    %c0_i32_1 = arith.constant 0 : i32
    return %c0_i32, %c0_i32_0 : i32, i32
  }
  func.func @transform_4(%arg0: i32) -> (i32, i32) {
    %c0_i32 = arith.constant 0 : i32
    %c0_i32_0 = arith.constant 0 : i32
    return %arg0, %c0_i32 : i32, i32
  }
}

</mosaic_0001>

<llo_original>
// kernel: tpu_custom_call.1
$region0: #{tpu_custom_call.1}
  #allocation0 [shape = 'u32[]', space=smem, size = 0x4, offset = 0x4, fixed_abs, tag = 'smem constant byte address 0x4 - core index']
  #allocation1 [shape = 'u32[144,128]{1,0:T(1,128)}', space=vmem, size = 0x12000, scoped, tag = 'internal scratch']
  %s0 = inlined_call_operand.hbm [shape: bf16[72,128], index: 0, kind: input, shape index: {}]
  %s1 = inlined_call_operand.hbm [shape: f32[1,128], index: 1, kind: input, shape index: {}]
  %s2 = inlined_call_operand.hbm [shape: f32[1,128], index: 2, kind: input, shape index: {}]
  %s3 = inlined_call_operand.hbm [shape: bf16[128,128], index: 3, kind: input, shape index: {}]
  %s4 = inlined_call_operand.hbm [shape: f32[72,128], index: 4, kind: output, shape index: {}]
  %s5 = sld [smem:[#allocation0]]
  $region42: #{tpu_custom_call.1} parent=0
    _
  %s7 = ssub.s32 1, %s5
  %s8 = scalar_select 0, %s7, %s5
  $region1: #{tpu_custom_call.1} parent=0
    #allocation2 [shape = 'u8[18432]{0}', space=vmem, size = 0x4800, scoped, tag = 'input window, operand 0, single buffered']
    #allocation3 [shape = 's32[1]{0}', space=sflag, size = 0x4, scoped, tag = 'scoped memory for tpu_custom_call.1']
    #allocation4 [shape = 's32[1]{0}', space=sflag, size = 0x4, scoped, tag = 'scoped memory for tpu_custom_call.1']
    #allocation5 [shape = 'u8[512]{0}', space=vmem, size = 0x400, scoped, tag = 'input window, operand 1, single buffered']
    #allocation6 [shape = 's32[1]{0}', space=sflag, size = 0x4, scoped, tag = 'scoped memory for tpu_custom_call.1']
    #allocation7 [shape = 'u8[512]{0}', space=vmem, size = 0x400, scoped, tag = 'input window, operand 2, single buffered']
    #allocation8 [shape = 'u8[32768]{0}', space=vmem, size = 0x8000, scoped, tag = 'input window, operand 3, single buffered']
    #allocation9 [shape = 's32[1]{0}', space=sflag, size = 0x4, scoped, tag = 'scoped memory for tpu_custom_call.1']
    #allocation10 [shape = 'u8[36864]{0}', space=vmem, size = 0x9000, scoped, tag = 'output window, operand 0, single buffered']
    %9 = vsyncpa [#allocation3], 0
    %10 = vsyncpa [#allocation6], 0
    %11 = vsyncpa [#allocation9], 0
    %12 = vsyncpa [#allocation4], 0
    // Predicated region
    $region2: #{tpu_custom_call.1} parent=1 // pred_check
      _
    $region3: #{tpu_custom_call.1} parent=1 // pred_check_branch
      %14 = sbr.rel (0) target = $region5
    $region4: #{tpu_custom_call.1} parent=1 // pred_region
      %s16 = ssub.s32 576, 576
      %17 = vsyncadd [#allocation3], %s16
      %s18 = sshll.u32 [#allocation2], 4
      %s19 = int_to_ptr.vmem [resolvable:$true] %s18
      %24 = dma.hbm_to_vmem [thread:$0]  %s0, 576, %s19, [#allocation3], 64, 64, 4
    $region5: #{tpu_custom_call.1} parent=1 // pred_fallthru
      _
    // Predicated region
    $region6: #{tpu_custom_call.1} parent=1 // pred_check
      _
    $region7: #{tpu_custom_call.1} parent=1 // pred_check_branch
      %26 = sbr.rel (0) target = $region9
    $region8: #{tpu_custom_call.1} parent=1 // pred_region
      %s28 = ssub.s32 16, 16
      %29 = vsyncadd [#allocation6], %s28
      %s31 = sshll.u32 [#allocation5], 4
      %s32 = int_to_ptr.vmem [resolvable:$true] %s31
      %34 = dma.hbm_to_vmem [thread:$0]  %s1, 16, %s32, [#allocation6]
    $region9: #{tpu_custom_call.1} parent=1 // pred_fallthru
      _
    // Predicated region
    $region10: #{tpu_custom_call.1} parent=1 // pred_check
      _
    $region11: #{tpu_custom_call.1} parent=1 // pred_check_branch
      %36 = sbr.rel (0) target = $region13
    $region12: #{tpu_custom_call.1} parent=1 // pred_region
      %s38 = ssub.s32 16, 16
      %39 = vsyncadd [#allocation6], %s38
      %s41 = sshll.u32 [#allocation7], 4
      %s42 = int_to_ptr.vmem [resolvable:$true] %s41
      %44 = dma.hbm_to_vmem [thread:$0]  %s2, 16, %s42, [#allocation6]
    $region13: #{tpu_custom_call.1} parent=1 // pred_fallthru
      _
    // Predicated region
    $region14: #{tpu_custom_call.1} parent=1 // pred_check
      _
    $region15: #{tpu_custom_call.1} parent=1 // pred_check_branch
      %46 = sbr.rel (0) target = $region17
    $region16: #{tpu_custom_call.1} parent=1 // pred_region
      %s48 = ssub.s32 1024, 1024
      %49 = vsyncadd [#allocation9], %s48
      %s50 = sshll.u32 [#allocation8], 4
      %s51 = int_to_ptr.vmem [resolvable:$true] %s50
      %56 = dma.hbm_to_vmem [thread:$0]  %s3, 1024, %s51, [#allocation9], 64, 64, 4
    $region17: #{tpu_custom_call.1} parent=1 // pred_fallthru
      _
    // Predicated region
    $region18: #{tpu_custom_call.1} parent=1 // pred_check
      _
    $region19: #{tpu_custom_call.1} parent=1 // pred_check_branch
      %58 = sbr.rel (0) target = $region21
    $region20: #{tpu_custom_call.1} parent=1 // pred_region
      %59 = dma.done [#allocation3], 576
    $region21: #{tpu_custom_call.1} parent=1 // pred_fallthru
      _
    // Predicated region
    $region22: #{tpu_custom_call.1} parent=1 // pred_check
      _
    $region23: #{tpu_custom_call.1} parent=1 // pred_check_branch
      %61 = sbr.rel (0) target = $region25
    $region24: #{tpu_custom_call.1} parent=1 // pred_region
      %62 = dma.done [#allocation6], 16
    $region25: #{tpu_custom_call.1} parent=1 // pred_fallthru
      _
    // Predicated region
    $region26: #{tpu_custom_call.1} parent=1 // pred_check
      _
    $region27: #{tpu_custom_call.1} parent=1 // pred_check_branch
      %64 = sbr.rel (0) target = $region29
    $region28: #{tpu_custom_call.1} parent=1 // pred_region
      %65 = dma.done [#allocation6], 16
    $region29: #{tpu_custom_call.1} parent=1 // pred_fallthru
      _
    // Predicated region
    $region30: #{tpu_custom_call.1} parent=1 // pred_check
      _
    $region31: #{tpu_custom_call.1} parent=1 // pred_check_branch
      %67 = sbr.rel (0) target = $region33
    $region32: #{tpu_custom_call.1} parent=1 // pred_region
      %68 = dma.done [#allocation9], 1024
    $region33: #{tpu_custom_call.1} parent=1 // pred_fallthru
      _
    %v70 = vld [vmem:[#allocation2] sm:$0xf]
    %v71 = vld [vmem:[#allocation2 + $0x4] sm:$0xf]
    %v72 = vld [vmem:[#allocation2 + $0x8] sm:$0xf]
    %v73 = vld [vmem:[#allocation2 + $0xc] sm:$0xf]
    %v74 = vld [vmem:[#allocation2 + $0x10] sm:$0xf]
    %v75 = vld [vmem:[#allocation2 + $0x14] sm:$0xf]
    %v76 = vld [vmem:[#allocation2 + $0x18] sm:$0xf]
    %v77 = vld [vmem:[#allocation2 + $0x1c] sm:$0xf]
    %v78 = vld [vmem:[#allocation2 + $0x20] sm:$0xf]
    %v79 = vunpack.c.l.bf16 %v70
    %v80 = vunpack.c.l.bf16 %v71
    %v81 = vunpack.c.l.bf16 %v72
    %v82 = vunpack.c.l.bf16 %v73
    %v83 = vunpack.c.l.bf16 %v74
    %v84 = vunpack.c.l.bf16 %v75
    %v85 = vunpack.c.l.bf16 %v76
    %v86 = vunpack.c.l.bf16 %v77
    %v87 = vunpack.c.l.bf16 %v78
    %88 = vadd.xlane.f32.xlu0 %v79
    %v89 = vpop.xlane.xlu0 %88
    %90 = vadd.xlane.f32.xlu0 %v80
    %v91 = vpop.xlane.xlu0 %90
    %92 = vadd.xlane.f32.xlu0 %v81
    %v93 = vpop.xlane.xlu0 %92
    %94 = vadd.xlane.f32.xlu0 %v82
    %v95 = vpop.xlane.xlu0 %94
    %96 = vadd.xlane.f32.xlu0 %v83
    %v97 = vpop.xlane.xlu0 %96
    %98 = vadd.xlane.f32.xlu0 %v84
    %v99 = vpop.xlane.xlu0 %98
    %100 = vadd.xlane.f32.xlu0 %v85
    %v101 = vpop.xlane.xlu0 %100
    %102 = vadd.xlane.f32.xlu0 %v86
    %v103 = vpop.xlane.xlu0 %102
    %104 = vadd.xlane.f32.xlu0 %v87
    %v105 = vpop.xlane.xlu0 %104
    %v106 = vrcp.pop 128.0
    %v107 = vmul.f32 %v89, %v106
    %v108 = vmul.f32 %v91, %v106
    %v109 = vmul.f32 %v93, %v106
    %v110 = vmul.f32 %v95, %v106
    %v111 = vmul.f32 %v97, %v106
    %v112 = vmul.f32 %v99, %v106
    %v113 = vmul.f32 %v101, %v106
    %v114 = vmul.f32 %v103, %v106
    %v115 = vmul.f32 %v105, %v106
    %v116 = vsub.f32 %v79, %v107
    %v117 = vsub.f32 %v80, %v108
    %v118 = vsub.f32 %v81, %v109
    %v119 = vsub.f32 %v82, %v110
    %v120 = vsub.f32 %v83, %v111
    %v121 = vsub.f32 %v84, %v112
    %v122 = vsub.f32 %v85, %v113
    %v123 = vsub.f32 %v86, %v114
    %v124 = vsub.f32 %v87, %v115
    %v125 = vmul.f32 %v116, %v116
    %v126 = vmul.f32 %v117, %v117
    %v127 = vmul.f32 %v118, %v118
    %v128 = vmul.f32 %v119, %v119
    %v129 = vmul.f32 %v120, %v120
    %v130 = vmul.f32 %v121, %v121
    %v131 = vmul.f32 %v122, %v122
    %v132 = vmul.f32 %v123, %v123
    %v133 = vmul.f32 %v124, %v124
    %134 = vadd.xlane.f32.xlu0 %v125
    %v135 = vpop.xlane.xlu0 %134
    %136 = vadd.xlane.f32.xlu0 %v126
    %v137 = vpop.xlane.xlu0 %136
    %138 = vadd.xlane.f32.xlu0 %v127
    %v139 = vpop.xlane.xlu0 %138
    %140 = vadd.xlane.f32.xlu0 %v128
    %v141 = vpop.xlane.xlu0 %140
    %142 = vadd.xlane.f32.xlu0 %v129
    %v143 = vpop.xlane.xlu0 %142
    %144 = vadd.xlane.f32.xlu0 %v130
    %v145 = vpop.xlane.xlu0 %144
    %146 = vadd.xlane.f32.xlu0 %v131
    %v147 = vpop.xlane.xlu0 %146
    %148 = vadd.xlane.f32.xlu0 %v132
    %v149 = vpop.xlane.xlu0 %148
    %150 = vadd.xlane.f32.xlu0 %v133
    %v151 = vpop.xlane.xlu0 %150
    %v152 = vmul.f32 %v135, %v106
    %v153 = vmul.f32 %v137, %v106
    %v154 = vmul.f32 %v139, %v106
    %v155 = vmul.f32 %v141, %v106
    %v156 = vmul.f32 %v143, %v106
    %v157 = vmul.f32 %v145, %v106
    %v158 = vmul.f32 %v147, %v106
    %v159 = vmul.f32 %v149, %v106
    %v160 = vmul.f32 %v151, %v106
    %v161 = vadd.f32 %v152, 1e-05
    %v162 = vadd.f32 %v153, 1e-05
    %v163 = vadd.f32 %v154, 1e-05
    %v164 = vadd.f32 %v155, 1e-05
    %v165 = vadd.f32 %v156, 1e-05
    %v166 = vadd.f32 %v157, 1e-05
    %v167 = vadd.f32 %v158, 1e-05
    %v168 = vadd.f32 %v159, 1e-05
    %v169 = vadd.f32 %v160, 1e-05
    %v170 = vrsqrt.pop %v161
    %v171 = vrsqrt.pop %v162
    %v172 = vrsqrt.pop %v163
    %v173 = vrsqrt.pop %v164
    %v174 = vrsqrt.pop %v165
    %v175 = vrsqrt.pop %v166
    %v176 = vrsqrt.pop %v167
    %v177 = vrsqrt.pop %v168
    %v178 = vrsqrt.pop %v169
    %v179 = vmul.f32 %v116, %v170
    %v180 = vmul.f32 %v117, %v171
    %v181 = vmul.f32 %v118, %v172
    %v182 = vmul.f32 %v119, %v173
    %v183 = vmul.f32 %v120, %v174
    %v184 = vmul.f32 %v121, %v175
    %v185 = vmul.f32 %v122, %v176
    %v186 = vmul.f32 %v123, %v177
    %v187 = vmul.f32 %v124, %v178
    %v188 = vld [vmem:[#allocation5] sm:$0x1]
    %v190 = vlaneseq
    %v191 = vshrl.u32 %v190, 7
    %v192 = vsub.s32 0, %v191
    %v193 = vrot.slane %v188, %v192
    %v195 = vmul.f32 %v179, %v193
    %v196 = vmul.f32 %v180, %v193
    %v197 = vmul.f32 %v181, %v193
    %v198 = vmul.f32 %v182, %v193
    %v199 = vmul.f32 %v183, %v193
    %v200 = vmul.f32 %v184, %v193
    %v201 = vmul.f32 %v185, %v193
    %v202 = vmul.f32 %v186, %v193
    %v203 = vmul.f32 %v187, %v193
    %v204 = vld [vmem:[#allocation7] sm:$0x1]
    %v206 = vlaneseq
    %v207 = vshrl.u32 %v206, 7
    %v208 = vsub.s32 0, %v207
    %v209 = vrot.slane %v204, %v208
    %v211 = vadd.f32 %v195, %v209
    %v212 = vadd.f32 %v196, %v209
    %v213 = vadd.f32 %v197, %v209
    %v214 = vadd.f32 %v198, %v209
    %v215 = vadd.f32 %v199, %v209
    %v216 = vadd.f32 %v200, %v209
    %v217 = vadd.f32 %v201, %v209
    %v218 = vadd.f32 %v202, %v209
    %v219 = vadd.f32 %v203, %v209
    %v220 = vpack.c.bf16 %v212, %v211
    %v221 = vpack.c.bf16 %v214, %v213
    %v222 = vpack.c.bf16 %v216, %v215
    %v223 = vpack.c.bf16 %v218, %v217
    %v224 = vpack.c.bf16 %v219, %v219
    %v225 = vld [vmem:[#allocation8] sm:$0xf]
    %v226 = vld [vmem:[#allocation8 + $0x4] sm:$0xf]
    %v227 = vld [vmem:[#allocation8 + $0x8] sm:$0xf]
    %v228 = vld [vmem:[#allocation8 + $0xc] sm:$0xf]
    %v229 = vld [vmem:[#allocation8 + $0x10] sm:$0xf]
    %v230 = vld [vmem:[#allocation8 + $0x14] sm:$0xf]
    %v231 = vld [vmem:[#allocation8 + $0x18] sm:$0xf]
    %v232 = vld [vmem:[#allocation8 + $0x1c] sm:$0xf]
    %v233 = vld [vmem:[#allocation8 + $0x20] sm:$0xf]
    %v234 = vld [vmem:[#allocation8 + $0x24] sm:$0xf]
    %v235 = vld [vmem:[#allocation8 + $0x28] sm:$0xf]
    %v236 = vld [vmem:[#allocation8 + $0x2c] sm:$0xf]
    %v237 = vld [vmem:[#allocation8 + $0x30] sm:$0xf]
    %v238 = vld [vmem:[#allocation8 + $0x34] sm:$0xf]
    %v239 = vld [vmem:[#allocation8 + $0x38] sm:$0xf]
    %v240 = vld [vmem:[#allocation8 + $0x3c] sm:$0xf]
    %v257 = vunpack.c.l.b16 %v225
    %v258 = vunpack.c.l.b16 %v226
    %v259 = vunpack.c.l.b16 %v227
    %v260 = vunpack.c.l.b16 %v228
    %v261 = vunpack.c.l.b16 %v229
    %v262 = vunpack.c.l.b16 %v230
    %v263 = vunpack.c.l.b16 %v231
    %v264 = vunpack.c.l.b16 %v232
    %v265 = vunpack.c.l.b16 %v233
    %v266 = vunpack.c.l.b16 %v234
    %v267 = vunpack.c.l.b16 %v235
    %v268 = vunpack.c.l.b16 %v236
    %v269 = vunpack.c.l.b16 %v237
    %v270 = vunpack.c.l.b16 %v238
    %v271 = vunpack.c.l.b16 %v239
    %v272 = vunpack.c.l.b16 %v240
    %v273 = vpack.c.b16 %v258, %v257
    %v274 = vpack.c.b16 %v260, %v259
    %v275 = vpack.c.b16 %v262, %v261
    %v276 = vpack.c.b16 %v264, %v263
    %v277 = vpack.c.b16 %v266, %v265
    %v278 = vpack.c.b16 %v268, %v267
    %v279 = vpack.c.b16 %v270, %v269
    %v280 = vpack.c.b16 %v272, %v271
    %289 = vmatprep.subr.bf16.mxu0 0
    %290 = vmatpush1.bf16.msra.mxu0 %v273
    %291 = vmatprep.subr.bf16.mxu0 0
    %292 = vmatpush1.bf16.msra.mxu0 %v274
    %293 = vmatprep.subr.bf16.mxu0 0
    %294 = vmatpush1.bf16.msra.mxu0 %v275
    %295 = vmatprep.subr.bf16.mxu0 0
    %296 = vmatpush1.bf16.msra.mxu0 %v276
    %297 = vmatprep.subr.bf16.mxu0 0
    %298 = vmatpush1.bf16.msra.mxu0 %v277
    %299 = vmatprep.subr.bf16.mxu0 0
    %300 = vmatpush1.bf16.msra.mxu0 %v278
    %301 = vmatprep.subr.bf16.mxu0 0
    %302 = vmatpush1.bf16.msra.mxu0 %v279
    %303 = vmatprep.subr.bf16.mxu0 0
    %304 = vmatpush1.bf16.msra.mxu0 %v280
    %305 = vmatprep.subr.bf16.mxu0 0
    %306 = vmatpush1.bf16.msra.mxu0 0
    %307 = vmatprep.subr.bf16.mxu0 0
    %308 = vmatpush1.bf16.msra.mxu0 0
    %309 = vmatprep.subr.bf16.mxu0 0
    %310 = vmatpush1.bf16.msra.mxu0 0
    %311 = vmatprep.subr.bf16.mxu0 0
    %312 = vmatpush1.bf16.msra.mxu0 0
    %313 = vmatprep.subr.bf16.mxu0 0
    %314 = vmatpush1.bf16.msra.mxu0 0
    %315 = vmatprep.subr.bf16.mxu0 0
    %316 = vmatpush1.bf16.msra.mxu0 0
    %317 = vmatprep.subr.bf16.mxu0 0
    %318 = vmatpush1.bf16.msra.mxu0 0
    %319 = vmatprep.subr.bf16.mxu0 0
    %320 = vmatpush1.bf16.msra.mxu0 0
    %321 = vmatprep.mubr.bf16.mxu0 0
    %322 = vmatmul.mubr.bf16.gmra.mrb[0].mxu0 %v220
    %v323 = vpop.f32.mrb[0].mxu0
    %v324 = vadd.f32 0.0, %v323
    %v325 = vpop.f32.mrb[0].mxu0
    %v326 = vpop.f32.mrb[0].mxu0
    %v327 = vadd.f32 0.0, %v326
    %v328 = vpop.f32.mrb[0].mxu0
    %329 = vmatprep.mubr.bf16.mxu0 0
    %330 = vmatmul.mubr.bf16.gmra.mrb[0].mxu0 %v221
    %v331 = vpop.f32.mrb[0].mxu0
    %v332 = vadd.f32 0.0, %v331
    %v333 = vpop.f32.mrb[0].mxu0
    %v334 = vpop.f32.mrb[0].mxu0
    %v335 = vadd.f32 0.0, %v334
    %v336 = vpop.f32.mrb[0].mxu0
    %337 = vmatprep.mubr.bf16.mxu0 0
    %338 = vmatmul.mubr.bf16.gmra.mrb[0].mxu0 %v222
    %v339 = vpop.f32.mrb[0].mxu0
    %v340 = vadd.f32 0.0, %v339
    %v341 = vpop.f32.mrb[0].mxu0
    %v342 = vpop.f32.mrb[0].mxu0
    %v343 = vadd.f32 0.0, %v342
    %v344 = vpop.f32.mrb[0].mxu0
    %345 = vmatprep.mubr.bf16.mxu0 0
    %346 = vmatmul.mubr.bf16.gmra.mrb[0].mxu0 %v223
    %v347 = vpop.f32.mrb[0].mxu0
    %v348 = vadd.f32 0.0, %v347
    %v349 = vpop.f32.mrb[0].mxu0
    %v350 = vpop.f32.mrb[0].mxu0
    %v351 = vadd.f32 0.0, %v350
    %v352 = vpop.f32.mrb[0].mxu0
    %353 = vmatprep.mubr.bf16.mxu0 0
    %354 = vmatmul.mubr.bf16.gmra.mrb[0].mxu0 %v224
    %v355 = vpop.f32.mrb[0].mxu0
    %v356 = vadd.f32 0.0, %v355
    %v357 = vpop.f32.mrb[0].mxu0
    %v358 = vpop.f32.mrb[0].mxu0
    %v359 = vpop.f32.mrb[0].mxu0
    %360 = vdwg.mxu0
    %361 = vst [vmem:[#allocation10] sm:$0xff] %v324
    %362 = vst [vmem:[#allocation10 + $0x8] sm:$0xff] %v327
    %363 = vst [vmem:[#allocation10 + $0x10] sm:$0xff] %v332
    %364 = vst [vmem:[#allocation10 + $0x18] sm:$0xff] %v335
    %365 = vst [vmem:[#allocation10 + $0x20] sm:$0xff] %v340
    %366 = vst [vmem:[#allocation10 + $0x28] sm:$0xff] %v343
    %367 = vst [vmem:[#allocation10 + $0x30] sm:$0xff] %v348
    %368 = vst [vmem:[#allocation10 + $0x38] sm:$0xff] %v351
    %369 = vst [vmem:[#allocation10 + $0x40] sm:$0xff] %v356
    // Predicated region
    $region34: #{tpu_custom_call.1} parent=1 // pred_check
      _
    $region35: #{tpu_custom_call.1} parent=1 // pred_check_branch
      %371 = sbr.rel (0) target = $region37
    $region36: #{tpu_custom_call.1} parent=1 // pred_region
      %s373 = ssub.s32 1152, 1152
      %374 = vsyncadd [#allocation4], %s373
      %s375 = sshll.u32 [#allocation10], 4
      %s376 = int_to_ptr.vmem [resolvable:$true] %s375
      %381 = dma.vmem_to_hbm [thread:$0]  %s376, 1152, %s4, [#allocation4], 128, 128, 8
    $region37: #{tpu_custom_call.1} parent=1 // pred_fallthru
      _
    // Predicated region
    $region38: #{tpu_custom_call.1} parent=1 // pred_check
      _
    $region39: #{tpu_custom_call.1} parent=1 // pred_check_branch
      %383 = sbr.rel (0) target = $region41
    $region40: #{tpu_custom_call.1} parent=1 // pred_region
      %384 = dma.done [#allocation4], 1152
    $region41: #{tpu_custom_call.1} parent=1 // pred_fallthru
      _
    %385 = vsyncpa [#allocation3], 1
    %386 = vsyncpa [#allocation6], 1
    %387 = vsyncpa [#allocation9], 1
    %388 = vsyncpa [#allocation4], 1

</llo_original>
